<compile_context>
chip_gen: v7x
topology: tpu7x:2x2x1
jax: 0.10.0
libtpu: 0.0.40
codegen_flags: <defaults>
</compile_context>

<pallas_src>
import math

import jax
import jax.numpy as jnp
from jax.experimental import pallas as pl
from jax.experimental.pallas import tpu as pltpu


def _resnet_kernel(x_ref, skip_ref, w0t_ref, b0_ref, w1t_ref, b1_ref, o_ref):
    # x_ref/skip_ref/o_ref: (TM, Cp) tile; w*t_ref: (Cp, Cp) pre-scaled, pre-transposed;
    # b*_ref: (1, Cp).
    x = x_ref[...]

    # fc0: addmm(b0, x, W0.T)  -- gain already folded into w0t, accumulate in f32.
    h = jnp.dot(x, w0t_ref[...], preferred_element_type=jnp.float32)
    h = h + b0_ref[...].astype(jnp.float32)
    h = h.astype(x.dtype)  # match torch addmm output dtype between layers

    # fc1: addmm(b1, h, W1.T)
    h2 = jnp.dot(h, w1t_ref[...], preferred_element_type=jnp.float32)

    # bias + residual + leaky_relu(0.2), all in one f32 elementwise pass.
    y = h2 + b1_ref[...].astype(jnp.float32) + skip_ref[...].astype(jnp.float32)
    y = jnp.where(y >= 0.0, y, 0.2 * y)
    o_ref[...] = y.astype(o_ref.dtype)


def resnet_layer(x, skip, w0, b0, w1, b1, *, tile_m=None):
    """Pallas implementation of ResnetLayer.forward(x, _x)."""
    orig_shape = x.shape
    C = orig_shape[-1]
    x2d = x.reshape(-1, C)
    skip2d = skip.reshape(-1, C)
    M = x2d.shape[0]
    dtype = x.dtype

    # --- one-time host/XLA-side prep (outside the per-tile kernel body) -----
    # Fold the runtime weight gain (use_wscale: he_std = 1/sqrt(fan_in)) into
    # the weights and pre-transpose so the kernel contracts without W.T.
    w_gain = 1.0 / math.sqrt(C)
    w0t = (w0.astype(jnp.float32) * w_gain).T.astype(dtype)   # (C_in, C_out)
    w1t = (w1.astype(jnp.float32) * w_gain).T.astype(dtype)

    # Lane-dense padding: channel axis up to a multiple of 128.
    C_pad = max(128, ((C + 127) // 128) * 128)
    pad_c = C_pad - C
    if pad_c:
        x2d = jnp.pad(x2d, ((0, 0), (0, pad_c)))
        skip2d = jnp.pad(skip2d, ((0, 0), (0, pad_c)))
        w0t = jnp.pad(w0t, ((0, pad_c), (0, pad_c)))
        w1t = jnp.pad(w1t, ((0, pad_c), (0, pad_c)))
        b0p = jnp.pad(b0, (0, pad_c))
        b1p = jnp.pad(b1, (0, pad_c))
    else:
        b0p, b1p = b0, b1
    b0_2d = b0p.reshape(1, C_pad).astype(dtype)
    b1_2d = b1p.reshape(1, C_pad).astype(dtype)

    # Row-tile choice: one grid step when the whole problem is small, otherwise
    # large MXU-friendly tiles (multiple of 8 sublanes, up to 512 rows).
    if tile_m is None:
        tile_m = 512 if M >= 512 else ((M + 7) // 8) * 8
    tile_m = max(8, ((tile_m + 7) // 8) * 8)

    M_pad = ((M + tile_m - 1) // tile_m) * tile_m
    if M_pad != M:
        x2d = jnp.pad(x2d, ((0, M_pad - M), (0, 0)))
        skip2d = jnp.pad(skip2d, ((0, M_pad - M), (0, 0)))

    grid_m = M_pad // tile_m

    out2d = pl.pallas_call(
        _resnet_kernel,
        out_shape=jax.ShapeDtypeStruct((M_pad, C_pad), dtype),
        grid_spec=pltpu.PrefetchScalarGridSpec(
            num_scalar_prefetch=0,
            grid=(grid_m,),
            in_specs=[
                pl.BlockSpec((tile_m, C_pad), lambda i: (i, 0)),   # x tile
                pl.BlockSpec((tile_m, C_pad), lambda i: (i, 0)),   # skip tile
                pl.BlockSpec((C_pad, C_pad), lambda i: (0, 0)),    # W0^T (resident)
                pl.BlockSpec((1, C_pad), lambda i: (0, 0)),        # b0
                pl.BlockSpec((C_pad, C_pad), lambda i: (0, 0)),    # W1^T (resident)
                pl.BlockSpec((1, C_pad), lambda i: (0, 0)),        # b1
            ],
            out_specs=pl.BlockSpec((tile_m, C_pad), lambda i: (i, 0)),
        ),
        compiler_params=pltpu.CompilerParams(
            dimension_semantics=("parallel",)),
    )(x2d, skip2d, w0t, b0_2d, w1t, b1_2d)

    return out2d[:M, :C].reshape(orig_shape)


def reference(x, skip, w0, b0, w1, b1):
    """Pure-JAX reference mirroring the PyTorch forward."""
    C = x.shape[-1]
    w_gain = 1.0 / jnp.sqrt(jnp.float32(C))
    x2d = x.reshape(-1, C)
    h = x2d @ (w0 * w_gain).T + b0
    h = h @ (w1 * w_gain).T + b1
    y = h.reshape(x.shape) + skip
    return jnp.where(y >= 0, y, 0.2 * y)


if __name__ == "__main__":
    B, S, C = 2, 8, 32   # small shapes implied by the FC-based forward
    key = jax.random.PRNGKey(0)
    kx, ks, kw0, kw1 = jax.random.split(key, 4)

    x = jax.random.normal(kx, (B, S, C), dtype=jnp.float32)
    skip = jax.random.normal(ks, (B, S, C), dtype=jnp.float32)

    # get_weight: randn(shape) * init_std with init_std = 1.0 (use_wscale)
    w0 = jax.random.normal(kw0, (C, C), dtype=jnp.float32)
    w1 = jax.random.normal(kw1, (C, C), dtype=jnp.float32)
    # get_bias: zeros
    b0 = jnp.zeros((C,), dtype=jnp.float32)
    b1 = jnp.zeros((C,), dtype=jnp.float32)

    out = resnet_layer(x, skip, w0, b0, w1, b1)
    out = jax.block_until_ready(out)

    ref = reference(x, skip, w0, b0, w1, b1)
    assert out.shape == x.shape
    assert jnp.allclose(out, ref, atol=1e-4, rtol=1e-4), "mismatch vs reference"

    print("KERNEL_OK")
</pallas_src>

<mosaic_0001>
module attributes {stable_mosaic.version = 11 : i64} {
  func.func @_resnet_kernel(%arg0: i32, %arg1: memref<16x128xf32, #tpu.memory_space<vmem>>, %arg2: memref<16x128xf32, #tpu.memory_space<vmem>>, %arg3: memref<128x128xf32, #tpu.memory_space<vmem>>, %arg4: memref<1x128xf32, #tpu.memory_space<vmem>>, %arg5: memref<128x128xf32, #tpu.memory_space<vmem>>, %arg6: memref<1x128xf32, #tpu.memory_space<vmem>>, %arg7: memref<16x128xf32, #tpu.memory_space<vmem>>) attributes {dimension_semantics = [#tpu.dimension_semantics<parallel>], iteration_bounds = array<i64: 1>, scalar_prefetch = 0 : i64, scratch_operands = 0 : i64, tpu.core_type = #tpu.core_type<tc>, window_params = [{transform_indices = @transform_0, window_bounds = array<i64: 16, 128>}, {transform_indices = @transform_1, window_bounds = array<i64: 16, 128>}, {pipeline_mode = #tpu.pipeline_mode<synchronous>, transform_indices = @transform_2, window_bounds = array<i64: 128, 128>}, {pipeline_mode = #tpu.pipeline_mode<synchronous>, transform_indices = @transform_3, window_bounds = array<i64: 1, 128>}, {pipeline_mode = #tpu.pipeline_mode<synchronous>, transform_indices = @transform_4, window_bounds = array<i64: 128, 128>}, {pipeline_mode = #tpu.pipeline_mode<synchronous>, transform_indices = @transform_5, window_bounds = array<i64: 1, 128>}, {transform_indices = @transform_6, window_bounds = array<i64: 16, 128>}]} {
    %c0 = arith.constant 0 : index
    %c0_0 = arith.constant 0 : index
    %0 = vector.load %arg1[%c0, %c0_0] : memref<16x128xf32, #tpu.memory_space<vmem>>, vector<16x128xf32>
    %c0_1 = arith.constant 0 : index
    %c0_2 = arith.constant 0 : index
    %1 = vector.load %arg3[%c0_1, %c0_2] : memref<128x128xf32, #tpu.memory_space<vmem>>, vector<128x128xf32>
    %cst = arith.constant dense<0.000000e+00> : vector<16x128xf32>
    %2 = tpu.matmul %0, %1, %cst {dimension_numbers = #tpu.dot_dimension_numbers<[1], [0], [0], [1], [0, 0, 1, 1], [], []>} : vector<16x128xf32>, vector<128x128xf32>, vector<16x128xf32> -> vector<16x128xf32>
    %c0_3 = arith.constant 0 : index
    %c0_4 = arith.constant 0 : index
    %3 = vector.load %arg4[%c0_3, %c0_4] : memref<1x128xf32, #tpu.memory_space<vmem>>, vector<1x128xf32>
    %4 = vector.broadcast %3 : vector<1x128xf32> to vector<16x128xf32>
    %5 = arith.addf %2, %4 : vector<16x128xf32>
    %c0_5 = arith.constant 0 : index
    %c0_6 = arith.constant 0 : index
    %6 = vector.load %arg5[%c0_5, %c0_6] : memref<128x128xf32, #tpu.memory_space<vmem>>, vector<128x128xf32>
    %cst_7 = arith.constant dense<0.000000e+00> : vector<16x128xf32>
    %7 = tpu.matmul %5, %6, %cst_7 {dimension_numbers = #tpu.dot_dimension_numbers<[1], [0], [0], [1], [0, 0, 1, 1], [], []>} : vector<16x128xf32>, vector<128x128xf32>, vector<16x128xf32> -> vector<16x128xf32>
    %c0_8 = arith.constant 0 : index
    %c0_9 = arith.constant 0 : index
    %8 = vector.load %arg6[%c0_8, %c0_9] : memref<1x128xf32, #tpu.memory_space<vmem>>, vector<1x128xf32>
    %9 = vector.broadcast %8 : vector<1x128xf32> to vector<16x128xf32>
    %10 = arith.addf %7, %9 : vector<16x128xf32>
    %c0_10 = arith.constant 0 : index
    %c0_11 = arith.constant 0 : index
    %11 = vector.load %arg2[%c0_10, %c0_11] : memref<16x128xf32, #tpu.memory_space<vmem>>, vector<16x128xf32>
    %12 = arith.addf %10, %11 : vector<16x128xf32>
    %cst_12 = arith.constant 0.000000e+00 : f32
    %13 = vector.broadcast %cst_12 : f32 to vector<16x128xf32>
    %14 = arith.cmpf oge, %12, %13 : vector<16x128xf32>
    %cst_13 = arith.constant 2.000000e-01 : f32
    %15 = vector.broadcast %cst_13 : f32 to vector<16x128xf32>
    %16 = arith.mulf %15, %12 : vector<16x128xf32>
    %17 = arith.select %14, %12, %16 : vector<16x128xi1>, vector<16x128xf32>
    %c0_14 = arith.constant 0 : index
    %c0_15 = arith.constant 0 : index
    %18 = vector.load %arg7[%c0_14, %c0_15] : memref<16x128xf32, #tpu.memory_space<vmem>>, vector<16x128xf32>
    tpu.vector_store %arg7[%c0_14, %c0_15], %17 {strides = array<i32>} : memref<16x128xf32, #tpu.memory_space<vmem>>, vector<16x128xf32>,
    return
  }
  func.func @transform_0(%arg0: i32) -> (i32, i32) {
    %c0_i32 = arith.constant 0 : i32
    %c0_i32_0 = arith.constant 0 : i32
    return %arg0, %c0_i32 : i32, i32
  }
  func.func @transform_1(%arg0: i32) -> (i32, i32) {
    %c0_i32 = arith.constant 0 : i32
    %c0_i32_0 = arith.constant 0 : i32
    return %arg0, %c0_i32 : i32, i32
  }
  func.func @transform_2(%arg0: i32) -> (i32, i32) {
    %c0_i32 = arith.constant 0 : i32
    %c0_i32_0 = arith.constant 0 : i32
    %c0_i32_1 = arith.constant 0 : i32
    return %c0_i32, %c0_i32_0 : i32, i32
  }
  func.func @transform_3(%arg0: i32) -> (i32, i32) {
    %c0_i32 = arith.constant 0 : i32
    %c0_i32_0 = arith.constant 0 : i32
    %c0_i32_1 = arith.constant 0 : i32
    return %c0_i32, %c0_i32_0 : i32, i32
  }
  func.func @transform_4(%arg0: i32) -> (i32, i32) {
    %c0_i32 = arith.constant 0 : i32
    %c0_i32_0 = arith.constant 0 : i32
    %c0_i32_1 = arith.constant 0 : i32
    return %c0_i32, %c0_i32_0 : i32, i32
  }
  func.func @transform_5(%arg0: i32) -> (i32, i32) {
    %c0_i32 = arith.constant 0 : i32
    %c0_i32_0 = arith.constant 0 : i32
    %c0_i32_1 = arith.constant 0 : i32
    return %c0_i32, %c0_i32_0 : i32, i32
  }
  func.func @transform_6(%arg0: i32) -> (i32, i32) {
    %c0_i32 = arith.constant 0 : i32
    %c0_i32_0 = arith.constant 0 : i32
    return %arg0, %c0_i32 : i32, i32
  }
}

</mosaic_0001>

<llo_original>
// kernel: tpu_custom_call.1
$region0: #{tpu_custom_call.1}
  #allocation0 [shape = 'u32[]', space=smem, size = 0x4, offset = 0x4, fixed_abs, tag = 'smem constant byte address 0x4 - core index']
  #allocation1 [shape = 'u32[144,128]{1,0:T(1,128)}', space=vmem, size = 0x12000, scoped, tag = 'internal scratch']
  %s0 = inlined_call_operand.hbm [shape: f32[16,128], index: 0, kind: input, shape index: {}]
  %s1 = inlined_call_operand.hbm [shape: f32[16,128], index: 1, kind: input, shape index: {}]
  %s2 = inlined_call_operand.hbm [shape: f32[128,128], index: 2, kind: input, shape index: {}]
  %s3 = inlined_call_operand.vmem [shape: f32[1,128], index: 3, kind: input, shape index: {}]
  %s4 = inlined_call_operand.hbm [shape: f32[128,128], index: 4, kind: input, shape index: {}]
  %s5 = inlined_call_operand.vmem [shape: f32[1,128], index: 5, kind: input, shape index: {}]
  %s6 = inlined_call_operand.hbm [shape: f32[16,128], index: 6, kind: output, shape index: {}]
  %s7 = sld [smem:[#allocation0]]
  $region50: #{tpu_custom_call.1} parent=0
    _
  %s9 = ssub.s32 1, %s7
  %s10 = scalar_select 0, %s9, %s7
  $region1: #{tpu_custom_call.1} parent=0
    #allocation2 [shape = 'u8[8192]{0}', space=vmem, size = 0x2000, scoped, tag = 'input window, operand 0, single buffered']
    #allocation3 [shape = 's32[1]{0}', space=sflag, size = 0x4, scoped, tag = 'scoped memory for tpu_custom_call.1']
    #allocation4 [shape = 's32[1]{0}', space=sflag, size = 0x4, scoped, tag = 'scoped memory for tpu_custom_call.1']
    #allocation5 [shape = 'u8[8192]{0}', space=vmem, size = 0x2000, scoped, tag = 'input window, operand 1, single buffered']
    #allocation6 [shape = 's32[1]{0}', space=sflag, size = 0x4, scoped, tag = 'scoped memory for tpu_custom_call.1']
    #allocation7 [shape = 'u8[65536]{0}', space=vmem, size = 0x10000, scoped, tag = 'input window, operand 2, single buffered']
    #allocation8 [shape = 'u8[65536]{0}', space=vmem, size = 0x10000, scoped, tag = 'input window, operand 4, single buffered']
    #allocation9 [shape = 's32[1]{0}', space=sflag, size = 0x4, scoped, tag = 'scoped memory for tpu_custom_call.1']
    #allocation10 [shape = 'u8[8192]{0}', space=vmem, size = 0x2000, scoped, tag = 'output window, operand 0, single buffered']
    %11 = vsyncpa [#allocation3], 0
    %12 = vsyncpa [#allocation6], 0
    %13 = vsyncpa [#allocation9], 0
    %14 = vsyncpa [#allocation4], 0
    // Predicated region
    $region2: #{tpu_custom_call.1} parent=1 // pred_check
      _
    $region3: #{tpu_custom_call.1} parent=1 // pred_check_branch
      %16 = sbr.rel (0) target = $region5
    $region4: #{tpu_custom_call.1} parent=1 // pred_region
      %s18 = ssub.s32 256, 256
      %19 = vsyncadd [#allocation3], %s18
      %s20 = sshll.u32 [#allocation2], 4
      %s21 = int_to_ptr.vmem [resolvable:$true] %s20
      %26 = dma.hbm_to_vmem [thread:$0]  %s0, 256, %s21, [#allocation3], 128, 128, 8
    $region5: #{tpu_custom_call.1} parent=1 // pred_fallthru
      _
    // Predicated region
    $region6: #{tpu_custom_call.1} parent=1 // pred_check
      _
    $region7: #{tpu_custom_call.1} parent=1 // pred_check_branch
      %28 = sbr.rel (0) target = $region9
    $region8: #{tpu_custom_call.1} parent=1 // pred_region
      %s30 = ssub.s32 256, 256
      %31 = vsyncadd [#allocation6], %s30
      %s32 = sshll.u32 [#allocation5], 4
      %s33 = int_to_ptr.vmem [resolvable:$true] %s32
      %38 = dma.hbm_to_vmem [thread:$0]  %s1, 256, %s33, [#allocation6], 128, 128, 8
    $region9: #{tpu_custom_call.1} parent=1 // pred_fallthru
      _
    // Predicated region
    $region10: #{tpu_custom_call.1} parent=1 // pred_check
      _
    $region11: #{tpu_custom_call.1} parent=1 // pred_check_branch
      %40 = sbr.rel (0) target = $region13
    $region12: #{tpu_custom_call.1} parent=1 // pred_region
      %s42 = ssub.s32 2048, 2048
      %43 = vsyncadd [#allocation6], %s42
      %s44 = sshll.u32 [#allocation7], 4
      %s45 = int_to_ptr.vmem [resolvable:$true] %s44
      %50 = dma.hbm_to_vmem [thread:$0]  %s2, 2048, %s45, [#allocation6], 128, 128, 8
    $region13: #{tpu_custom_call.1} parent=1 // pred_fallthru
      _
    // Predicated region
    $region14: #{tpu_custom_call.1} parent=1 // pred_check
      _
    $region15: #{tpu_custom_call.1} parent=1 // pred_check_branch
      %52 = sbr.rel (0) target = $region17
    $region16: #{tpu_custom_call.1} parent=1 // pred_region
      _
    $region17: #{tpu_custom_call.1} parent=1 // pred_fallthru
      _
    // Predicated region
    $region18: #{tpu_custom_call.1} parent=1 // pred_check
      _
    $region19: #{tpu_custom_call.1} parent=1 // pred_check_branch
      %54 = sbr.rel (0) target = $region21
    $region20: #{tpu_custom_call.1} parent=1 // pred_region
      %s56 = ssub.s32 2048, 2048
      %57 = vsyncadd [#allocation9], %s56
      %s58 = sshll.u32 [#allocation8], 4
      %s59 = int_to_ptr.vmem [resolvable:$true] %s58
      %64 = dma.hbm_to_vmem [thread:$0]  %s4, 2048, %s59, [#allocation9], 128, 128, 8
    $region21: #{tpu_custom_call.1} parent=1 // pred_fallthru
      _
    // Predicated region
    $region22: #{tpu_custom_call.1} parent=1 // pred_check
      _
    $region23: #{tpu_custom_call.1} parent=1 // pred_check_branch
      %66 = sbr.rel (0) target = $region25
    $region24: #{tpu_custom_call.1} parent=1 // pred_region
      _
    $region25: #{tpu_custom_call.1} parent=1 // pred_fallthru
      _
    // Predicated region
    $region26: #{tpu_custom_call.1} parent=1 // pred_check
      _
    $region27: #{tpu_custom_call.1} parent=1 // pred_check_branch
      %68 = sbr.rel (0) target = $region29
    $region28: #{tpu_custom_call.1} parent=1 // pred_region
      %69 = dma.done [#allocation3], 256
    $region29: #{tpu_custom_call.1} parent=1 // pred_fallthru
      _
    // Predicated region
    $region30: #{tpu_custom_call.1} parent=1 // pred_check
      _
    $region31: #{tpu_custom_call.1} parent=1 // pred_check_branch
      %71 = sbr.rel (0) target = $region33
    $region32: #{tpu_custom_call.1} parent=1 // pred_region
      %72 = dma.done [#allocation6], 256
    $region33: #{tpu_custom_call.1} parent=1 // pred_fallthru
      _
    // Predicated region
    $region34: #{tpu_custom_call.1} parent=1 // pred_check
      _
    $region35: #{tpu_custom_call.1} parent=1 // pred_check_branch
      %74 = sbr.rel (0) target = $region37
    $region36: #{tpu_custom_call.1} parent=1 // pred_region
      %75 = dma.done [#allocation6], 2048
    $region37: #{tpu_custom_call.1} parent=1 // pred_fallthru
      _
    // Predicated region
    $region38: #{tpu_custom_call.1} parent=1 // pred_check
      _
    $region39: #{tpu_custom_call.1} parent=1 // pred_check_branch
      %77 = sbr.rel (0) target = $region41
    $region40: #{tpu_custom_call.1} parent=1 // pred_region
      %78 = dma.done [#allocation9], 2048
    $region41: #{tpu_custom_call.1} parent=1 // pred_fallthru
      _
    %v79 = vld [vmem:[#allocation2] sm:$0xff]
    %v80 = vld [vmem:[#allocation2 + $0x8] sm:$0xff]
    %v81 = vld [vmem:[#allocation7] sm:$0xff]
    %v82 = vld [vmem:[#allocation7 + $0x8] sm:$0xff]
    %v83 = vld [vmem:[#allocation7 + $0x10] sm:$0xff]
    %v84 = vld [vmem:[#allocation7 + $0x18] sm:$0xff]
    %v85 = vld [vmem:[#allocation7 + $0x20] sm:$0xff]
    %v86 = vld [vmem:[#allocation7 + $0x28] sm:$0xff]
    %v87 = vld [vmem:[#allocation7 + $0x30] sm:$0xff]
    %v88 = vld [vmem:[#allocation7 + $0x38] sm:$0xff]
    %v89 = vld [vmem:[#allocation7 + $0x40] sm:$0xff]
    %v90 = vld [vmem:[#allocation7 + $0x48] sm:$0xff]
    %v91 = vld [vmem:[#allocation7 + $0x50] sm:$0xff]
    %v92 = vld [vmem:[#allocation7 + $0x58] sm:$0xff]
    %v93 = vld [vmem:[#allocation7 + $0x60] sm:$0xff]
    %v94 = vld [vmem:[#allocation7 + $0x68] sm:$0xff]
    %v95 = vld [vmem:[#allocation7 + $0x70] sm:$0xff]
    %v96 = vld [vmem:[#allocation7 + $0x78] sm:$0xff]
    %v97 = vld [vmem:[%s3] sm:$0x1]
    %v99 = vlaneseq
    %v100 = vshrl.u32 %v99, 7
    %v101 = vsub.s32 0, %v100
    %v102 = vrot.slane %v97, %v101
    %104 = vmatprep.subr.mxu0 0.0
    %105 = vmatpush1.msra.mxu0 %v81
    %106 = vmatprep.subr.mxu0 0.0
    %107 = vmatpush1.msra.mxu0 %v82
    %108 = vmatprep.subr.mxu0 0.0
    %109 = vmatpush1.msra.mxu0 %v83
    %110 = vmatprep.subr.mxu0 0.0
    %111 = vmatpush1.msra.mxu0 %v84
    %112 = vmatprep.subr.mxu0 0.0
    %113 = vmatpush1.msra.mxu0 %v85
    %114 = vmatprep.subr.mxu0 0.0
    %115 = vmatpush1.msra.mxu0 %v86
    %116 = vmatprep.subr.mxu0 0.0
    %117 = vmatpush1.msra.mxu0 %v87
    %118 = vmatprep.subr.mxu0 0.0
    %119 = vmatpush1.msra.mxu0 %v88
    %120 = vmatprep.subr.mxu0 0.0
    %121 = vmatpush1.msra.mxu0 %v89
    %122 = vmatprep.subr.mxu0 0.0
    %123 = vmatpush1.msra.mxu0 %v90
    %124 = vmatprep.subr.mxu0 0.0
    %125 = vmatpush1.msra.mxu0 %v91
    %126 = vmatprep.subr.mxu0 0.0
    %127 = vmatpush1.msra.mxu0 %v92
    %128 = vmatprep.subr.mxu0 0.0
    %129 = vmatpush1.msra.mxu0 %v93
    %130 = vmatprep.subr.mxu0 0.0
    %131 = vmatpush1.msra.mxu0 %v94
    %132 = vmatprep.subr.mxu0 0.0
    %133 = vmatpush1.msra.mxu0 %v95
    %134 = vmatprep.subr.mxu0 0.0
    %135 = vmatpush1.msra.mxu0 %v96
    %136 = vmatprep.subr.mxu0 0.0
    %137 = vmatpush1.msra.mxu0 0.0
    %138 = vmatprep.subr.mxu0 0.0
    %139 = vmatpush1.msra.mxu0 0.0
    %140 = vmatprep.subr.mxu0 0.0
    %141 = vmatpush1.msra.mxu0 0.0
    %142 = vmatprep.subr.mxu0 0.0
    %143 = vmatpush1.msra.mxu0 0.0
    %144 = vmatprep.subr.mxu0 0.0
    %145 = vmatpush1.msra.mxu0 0.0
    %146 = vmatprep.subr.mxu0 0.0
    %147 = vmatpush1.msra.mxu0 0.0
    %148 = vmatprep.subr.mxu0 0.0
    %149 = vmatpush1.msra.mxu0 0.0
    %150 = vmatprep.subr.mxu0 0.0
    %151 = vmatpush1.msra.mxu0 0.0
    %152 = vmatprep.subr.mxu0 0.0
    %153 = vmatpush1.msra.mxu0 0.0
    %154 = vmatprep.subr.mxu0 0.0
    %155 = vmatpush1.msra.mxu0 0.0
    %156 = vmatprep.subr.mxu0 0.0
    %157 = vmatpush1.msra.mxu0 0.0
    %158 = vmatprep.subr.mxu0 0.0
    %159 = vmatpush1.msra.mxu0 0.0
    %160 = vmatprep.subr.mxu0 0.0
    %161 = vmatpush1.msra.mxu0 0.0
    %162 = vmatprep.subr.mxu0 0.0
    %163 = vmatpush1.msra.mxu0 0.0
    %164 = vmatprep.subr.mxu0 0.0
    %165 = vmatpush1.msra.mxu0 0.0
    %166 = vmatprep.subr.mxu0 0.0
    %167 = vmatpush1.msra.mxu0 0.0
    %168 = vmatprep.mubr.f32.mxu0 0.0
    %169 = vmatmul.mubr.f32.gmra.mrb[0].mxu0 %v79
    %v170 = vpop.f32.mrb[0].mxu0
    %v171 = vadd.f32 %v102, %v170
    %v172 = vpop.f32.mrb[0].mxu0
    %173 = vmatprep.mubr.f32.mxu0 0.0
    %174 = vmatmul.mubr.f32.gmra.mrb[0].mxu0 %v80
    %v175 = vpop.f32.mrb[0].mxu0
    %v176 = vadd.f32 %v102, %v175
    %v177 = vpop.f32.mrb[0].mxu0
    %178 = vdwg.mxu0
    %v179 = vld [vmem:[#allocation8] sm:$0xff]
    %v180 = vld [vmem:[#allocation8 + $0x8] sm:$0xff]
    %v181 = vld [vmem:[#allocation8 + $0x10] sm:$0xff]
    %v182 = vld [vmem:[#allocation8 + $0x18] sm:$0xff]
    %v183 = vld [vmem:[#allocation8 + $0x20] sm:$0xff]
    %v184 = vld [vmem:[#allocation8 + $0x28] sm:$0xff]
    %v185 = vld [vmem:[#allocation8 + $0x30] sm:$0xff]
    %v186 = vld [vmem:[#allocation8 + $0x38] sm:$0xff]
    %v187 = vld [vmem:[#allocation8 + $0x40] sm:$0xff]
    %v188 = vld [vmem:[#allocation8 + $0x48] sm:$0xff]
    %v189 = vld [vmem:[#allocation8 + $0x50] sm:$0xff]
    %v190 = vld [vmem:[#allocation8 + $0x58] sm:$0xff]
    %v191 = vld [vmem:[#allocation8 + $0x60] sm:$0xff]
    %v192 = vld [vmem:[#allocation8 + $0x68] sm:$0xff]
    %v193 = vld [vmem:[#allocation8 + $0x70] sm:$0xff]
    %v194 = vld [vmem:[#allocation8 + $0x78] sm:$0xff]
    %v195 = vld [vmem:[%s5] sm:$0x1]
    %v197 = vlaneseq
    %v198 = vshrl.u32 %v197, 7
    %v199 = vsub.s32 0, %v198
    %v200 = vrot.slane %v195, %v199
    %202 = vmatprep.subr.mxu0 0.0
    %203 = vmatpush1.msra.mxu0 %v179
    %204 = vmatprep.subr.mxu0 0.0
    %205 = vmatpush1.msra.mxu0 %v180
    %206 = vmatprep.subr.mxu0 0.0
    %207 = vmatpush1.msra.mxu0 %v181
    %208 = vmatprep.subr.mxu0 0.0
    %209 = vmatpush1.msra.mxu0 %v182
    %210 = vmatprep.subr.mxu0 0.0
    %211 = vmatpush1.msra.mxu0 %v183
    %212 = vmatprep.subr.mxu0 0.0
    %213 = vmatpush1.msra.mxu0 %v184
    %214 = vmatprep.subr.mxu0 0.0
    %215 = vmatpush1.msra.mxu0 %v185
    %216 = vmatprep.subr.mxu0 0.0
    %217 = vmatpush1.msra.mxu0 %v186
    %218 = vmatprep.subr.mxu0 0.0
    %219 = vmatpush1.msra.mxu0 %v187
    %220 = vmatprep.subr.mxu0 0.0
    %221 = vmatpush1.msra.mxu0 %v188
    %222 = vmatprep.subr.mxu0 0.0
    %223 = vmatpush1.msra.mxu0 %v189
    %224 = vmatprep.subr.mxu0 0.0
    %225 = vmatpush1.msra.mxu0 %v190
    %226 = vmatprep.subr.mxu0 0.0
    %227 = vmatpush1.msra.mxu0 %v191
    %228 = vmatprep.subr.mxu0 0.0
    %229 = vmatpush1.msra.mxu0 %v192
    %230 = vmatprep.subr.mxu0 0.0
    %231 = vmatpush1.msra.mxu0 %v193
    %232 = vmatprep.subr.mxu0 0.0
    %233 = vmatpush1.msra.mxu0 %v194
    %234 = vmatprep.subr.mxu0 0.0
    %235 = vmatpush1.msra.mxu0 0.0
    %236 = vmatprep.subr.mxu0 0.0
    %237 = vmatpush1.msra.mxu0 0.0
    %238 = vmatprep.subr.mxu0 0.0
    %239 = vmatpush1.msra.mxu0 0.0
    %240 = vmatprep.subr.mxu0 0.0
    %241 = vmatpush1.msra.mxu0 0.0
    %242 = vmatprep.subr.mxu0 0.0
    %243 = vmatpush1.msra.mxu0 0.0
    %244 = vmatprep.subr.mxu0 0.0
    %245 = vmatpush1.msra.mxu0 0.0
    %246 = vmatprep.subr.mxu0 0.0
    %247 = vmatpush1.msra.mxu0 0.0
    %248 = vmatprep.subr.mxu0 0.0
    %249 = vmatpush1.msra.mxu0 0.0
    %250 = vmatprep.subr.mxu0 0.0
    %251 = vmatpush1.msra.mxu0 0.0
    %252 = vmatprep.subr.mxu0 0.0
    %253 = vmatpush1.msra.mxu0 0.0
    %254 = vmatprep.subr.mxu0 0.0
    %255 = vmatpush1.msra.mxu0 0.0
    %256 = vmatprep.subr.mxu0 0.0
    %257 = vmatpush1.msra.mxu0 0.0
    %258 = vmatprep.subr.mxu0 0.0
    %259 = vmatpush1.msra.mxu0 0.0
    %260 = vmatprep.subr.mxu0 0.0
    %261 = vmatpush1.msra.mxu0 0.0
    %262 = vmatprep.subr.mxu0 0.0
    %263 = vmatpush1.msra.mxu0 0.0
    %264 = vmatprep.subr.mxu0 0.0
    %265 = vmatpush1.msra.mxu0 0.0
    %266 = vmatprep.mubr.f32.mxu0 0.0
    %267 = vmatmul.mubr.f32.gmra.mrb[0].mxu0 %v171
    %v268 = vpop.f32.mrb[0].mxu0
    %v269 = vadd.f32 %v200, %v268
    %v270 = vpop.f32.mrb[0].mxu0
    %271 = vmatprep.mubr.f32.mxu0 0.0
    %272 = vmatmul.mubr.f32.gmra.mrb[0].mxu0 %v176
    %v273 = vpop.f32.mrb[0].mxu0
    %v274 = vadd.f32 %v200, %v273
    %v275 = vpop.f32.mrb[0].mxu0
    %276 = vdwg.mxu0
    %v277 = vld [vmem:[#allocation5] sm:$0xff]
    %v278 = vld [vmem:[#allocation5 + $0x8] sm:$0xff]
    %v279 = vadd.f32 %v269, %v277
    %v280 = vadd.f32 %v274, %v278
    %vm281 = vcmp.ge.f32.partialorder %v279, 0.0
    %vm282 = vcmp.ge.f32.partialorder %v280, 0.0
    %v283 = vmul.f32 %v279, 0.2
    %v284 = vmul.f32 %v280, 0.2
    %v285 = vsel %vm281, %v279, %v283
    %v286 = vsel %vm282, %v280, %v284
    %287 = vst [vmem:[#allocation10] sm:$0xff] %v285
    %288 = vst [vmem:[#allocation10 + $0x8] sm:$0xff] %v286
    // Predicated region
    $region42: #{tpu_custom_call.1} parent=1 // pred_check
      _
    $region43: #{tpu_custom_call.1} parent=1 // pred_check_branch
      %290 = sbr.rel (0) target = $region45
    $region44: #{tpu_custom_call.1} parent=1 // pred_region
      %s292 = ssub.s32 256, 256
      %293 = vsyncadd [#allocation4], %s292
      %s294 = sshll.u32 [#allocation10], 4
      %s295 = int_to_ptr.vmem [resolvable:$true] %s294
      %300 = dma.vmem_to_hbm [thread:$0]  %s295, 256, %s6, [#allocation4], 128, 128, 8
    $region45: #{tpu_custom_call.1} parent=1 // pred_fallthru
      _
    // Predicated region
    $region46: #{tpu_custom_call.1} parent=1 // pred_check
      _
    $region47: #{tpu_custom_call.1} parent=1 // pred_check_branch
      %302 = sbr.rel (0) target = $region49
    $region48: #{tpu_custom_call.1} parent=1 // pred_region
      %303 = dma.done [#allocation4], 256
    $region49: #{tpu_custom_call.1} parent=1 // pred_fallthru
      _
    %304 = vsyncpa [#allocation3], 1
    %305 = vsyncpa [#allocation6], 1
    %306 = vsyncpa [#allocation9], 1
    %307 = vsyncpa [#allocation4], 1

</llo_original>
